<compile_context>
chip_gen: v5e
topology: v5e:2x2
jax: 0.10.0
libtpu: 0.0.40
codegen_flags: <defaults>
</compile_context>

<pallas_src>
import functools

import jax
import jax.numpy as jnp
from jax import lax
from jax.experimental import pallas as pl
from jax.experimental.pallas import tpu as pltpu


def _round_up(a, b):
    return -(-a // b) * b


def _gumbel_softmax_kernel(x_ref, g_ref, *refs, inv_temperature, plus, nseg, apply_temp):
    """x_ref: (TR, W) logits tile, W = nseg * H lanes (nseg original rows folded into the
    lane axis, each occupying H lanes).  g_ref: (1, W) f32 gumbel row, pre-scaled by 1/T.
    refs = (bd_ref, o_ref) when nseg > 1 else (o_ref,); bd_ref is the constant (W, W)
    block-diagonal ones matrix used to compute per-segment sums on the (otherwise idle)
    MXU."""
    o_ref = refs[-1]

    x = x_ref[...].astype(jnp.float32)
    if apply_temp:
        y = x * inv_temperature + g_ref[...]
    else:  # temperature == 1.0: skip the multiply (free VPU trim once mem-bound)
        y = x + g_ref[...]
    e = jnp.exp(y)

    if nseg == 1:
        denom = jnp.sum(e, axis=-1, keepdims=True) + plus          # (TR, 1) XLU reduce
        inv = pl.reciprocal(denom, approx=False)
    else:
        bd_ref = refs[0]
        # One MXU matmul gives every lane the sum over its own segment, already
        # broadcast across the segment's lanes.  Row-local: garbage rows of a ragged
        # boundary block only affect their own (dropped) output rows.
        segsum = lax.dot(e, bd_ref[...],
                         precision=lax.Precision.HIGHEST,
                         preferred_element_type=jnp.float32)        # (TR, W)
        inv = pl.reciprocal(segsum + plus, approx=False)

    o_ref[...] = (e * inv).astype(o_ref.dtype)


def gumbel_softmax(logits, gumbel_sample, *, temperature=1.0, plus=1.0, hard=False):
    """logits: (..., H); gumbel_sample: (H,) -- one noise row shared by all rows
    (this mirrors the reference PyTorch code, which draws a single (H,) sample)."""
    orig_shape = logits.shape
    orig_dtype = logits.dtype
    H = orig_shape[-1]
    R = 1
    for d in orig_shape[:-1]:
        R *= d

    inv_t = 1.0 / float(temperature)
    apply_temp = float(temperature) != 1.0
    # Pre-scale the shared gumbel row by 1/T (tiny, f32) so the kernel does at most one
    # multiply-add per element instead of add + divide.
    gumbel_row = gumbel_sample.astype(jnp.float32).reshape(H) * inv_t

    # Lane-dense fold: pack G = floor(128/H) consecutive rows into the 128-lane axis
    # whenever H < 128 (works for any such H; if H does not divide 128 the fold is
    # partial, W = G*H < 128, which still beats W = H).
    G = (128 // H) if H < 128 else 1
    G = max(G, 1)
    W = G * H

    RF = -(-R // G)            # folded rows (ceil)
    R_G = RF * G               # rows after the tiny fold pad (<= G-1 rows, often 0)

    logits2d = logits.reshape(R, H)
    if R_G != R:
        # Only the <= G-1 row pad needed for the fold reshape; NO tile-multiple padding.
        logits2d = jnp.pad(logits2d, ((0, R_G - R), (0, 0)))
    x2d = logits2d.reshape(RF, W)                  # free row-major merge of G rows/lane-row
    g2d = jnp.tile(gumbel_row, (G,)).reshape(1, W)

    # Row tile: ~2 MiB of f32 working data per block (in-kernel f32 temporaries dominate
    # VMEM; I/O blocks are then 1 MiB bf16 / 2 MiB f32, comfortably under the 32 MiB
    # scoped limit with double buffering).  Cap so the grid keeps >= ~4 steps on
    # medium/large inputs (v7x: 2 TensorCores shard the "parallel" axis).
    TR = max(8, ((2 * 1024 * 1024) // (W * 4)) // 8 * 8)
    TR = min(TR, max(8, _round_up(pl.cdiv(RF, 4), 8)))
    if RF <= TR:
        TR = RF                # single block equal to the full (small) array: legal shape
    grid = (pl.cdiv(RF, TR),)  # ragged last block handled by Pallas (OOB writes dropped)

    kernel = functools.partial(
        _gumbel_softmax_kernel,
        inv_temperature=inv_t, plus=float(plus), nseg=G, apply_temp=apply_temp,
    )

    in_specs = [
        pl.BlockSpec((TR, W), lambda i: (i, 0)),
        pl.BlockSpec((1, W), lambda i: (0, 0)),     # same noise row for every tile
    ]
    args = [x2d, g2d]
    if G > 1:
        seg_id = jnp.arange(W, dtype=jnp.int32) // H
        bd = (seg_id[:, None] == seg_id[None, :]).astype(jnp.float32)   # (W, W) <= 64 KiB
        in_specs.append(pl.BlockSpec((W, W), lambda i: (0, 0)))
        args.append(bd)

    out2d = pl.pallas_call(
        kernel,
        out_shape=jax.ShapeDtypeStruct((RF, W), orig_dtype),
        grid_spec=pltpu.PrefetchScalarGridSpec(
            num_scalar_prefetch=0,
            grid=grid,
            in_specs=in_specs,
            out_specs=pl.BlockSpec((TR, W), lambda i: (i, 0)),
        ),
        compiler_params=pltpu.CompilerParams(
            dimension_semantics=("parallel",),        # shard row tiles across TCs (v7x)
            vmem_limit_bytes=32 * 1024 * 1024,        # safe on v5e/v6e/v7x
        ),
    )(*args)

    y_soft = out2d.reshape(R_G, H)
    if R_G != R:
        y_soft = y_soft[:R]
    y_soft = y_soft.reshape(orig_shape)

    if hard:
        # TODO(synk): fuse the straight-through hard path (per-segment argmax / one-hot)
        # into the kernel to save this extra HBM round trip over y_soft.
        idx = jnp.argmax(y_soft, axis=-1)
        y_hard = jax.nn.one_hot(idx, H, dtype=y_soft.dtype)
        return y_hard - lax.stop_gradient(y_soft) + y_soft
    return y_soft


def sample_gumbel(key, n, eps=1e-20, dtype=jnp.float32):
    u = jax.random.uniform(key, (n,), dtype=dtype)
    return -jnp.log(-jnp.log(u + eps) + eps)


def reference_gumbel_softmax(logits, gumbel_sample, temperature=1.0, plus=1.0):
    y = (logits + gumbel_sample) / temperature
    e = jnp.exp(y)
    return e / (jnp.sum(e, axis=-1, keepdims=True) + plus)


if __name__ == "__main__":
    key = jax.random.PRNGKey(0)
    k_logits, k_gumbel = jax.random.split(key)

    # Small shapes consistent with the module: (batch=2, seq=8, hidden=32)
    B, S, H = 2, 8, 32
    logits = jax.random.normal(k_logits, (B, S, H), dtype=jnp.float32)
    gumbel = sample_gumbel(k_gumbel, H)

    out = gumbel_softmax(logits, gumbel, temperature=1.0, hard=False)
    out = jax.block_until_ready(out)

    ref = reference_gumbel_softmax(logits, gumbel, temperature=1.0)
    assert out.shape == logits.shape
    assert jnp.allclose(out, ref, atol=1e-5, rtol=1e-5), "mismatch vs reference"

    # hard=True straight-through path (one-hot forward value; JAX on top of kernel soft).
    out_hard = jax.block_until_ready(
        gumbel_softmax(logits, gumbel, temperature=1.0, hard=True))
    assert jnp.allclose(jnp.sum(out_hard, axis=-1), 1.0, atol=1e-5)

    # Exercise a row count that is NOT a tile/fold multiple (ragged last block path).
    logits_odd = jax.random.normal(k_logits, (3, 7, H), dtype=jnp.float32)
    out_odd = jax.block_until_ready(gumbel_softmax(logits_odd, gumbel))
    ref_odd = reference_gumbel_softmax(logits_odd, gumbel)
    assert jnp.allclose(out_odd, ref_odd, atol=1e-5, rtol=1e-5), "mismatch (ragged) vs reference"

    print("KERNEL_OK")
</pallas_src>

<mosaic_0001>
module attributes {stable_mosaic.version = 11 : i64} {
  func.func @_gumbel_softmax_kernel(%arg0: i32, %arg1: memref<4x128xf32, #tpu.memory_space<vmem>>, %arg2: memref<1x128xf32, #tpu.memory_space<vmem>>, %arg3: memref<128x128xf32, #tpu.memory_space<vmem>>, %arg4: memref<4x128xf32, #tpu.memory_space<vmem>>) attributes {dimension_semantics = [#tpu.dimension_semantics<parallel>], iteration_bounds = array<i64: 1>, scalar_prefetch = 0 : i64, scratch_operands = 0 : i64, tpu.core_type = #tpu.core_type<tc>, window_params = [{transform_indices = @transform_0, window_bounds = array<i64: 4, 128>}, {pipeline_mode = #tpu.pipeline_mode<synchronous>, transform_indices = @transform_1, window_bounds = array<i64: 1, 128>}, {pipeline_mode = #tpu.pipeline_mode<synchronous>, transform_indices = @transform_2, window_bounds = array<i64: 128, 128>}, {transform_indices = @transform_3, window_bounds = array<i64: 4, 128>}]} {
    %c0 = arith.constant 0 : index
    %c0_0 = arith.constant 0 : index
    %0 = vector.load %arg1[%c0, %c0_0] : memref<4x128xf32, #tpu.memory_space<vmem>>, vector<4x128xf32>
    %c0_1 = arith.constant 0 : index
    %c0_2 = arith.constant 0 : index
    %1 = vector.load %arg2[%c0_1, %c0_2] : memref<1x128xf32, #tpu.memory_space<vmem>>, vector<1x128xf32>
    %2 = vector.broadcast %1 : vector<1x128xf32> to vector<4x128xf32>
    %3 = arith.addf %0, %2 : vector<4x128xf32>
    %4 = math.exp %3 : vector<4x128xf32>
    %c0_3 = arith.constant 0 : index
    %c0_4 = arith.constant 0 : index
    %5 = vector.load %arg3[%c0_3, %c0_4] : memref<128x128xf32, #tpu.memory_space<vmem>>, vector<128x128xf32>
    %cst = arith.constant dense<0.000000e+00> : vector<4x128xf32>
    %6 = tpu.matmul %4, %5, %cst {dimension_numbers = #tpu.dot_dimension_numbers<[1], [0], [0], [1], [0, 0, 1, 1], [], []>, precision = #tpu.contract_precision<fp32>} : vector<4x128xf32>, vector<128x128xf32>, vector<4x128xf32> -> vector<4x128xf32>
    %cst_5 = arith.constant 1.000000e+00 : f32
    %7 = vector.broadcast %cst_5 : f32 to vector<4x128xf32>
    %8 = arith.addf %6, %7 : vector<4x128xf32>
    %9 = tpu.reciprocal %8 : vector<4x128xf32> -> vector<4x128xf32>
    %10 = arith.mulf %4, %9 : vector<4x128xf32>
    %c0_6 = arith.constant 0 : index
    %c0_7 = arith.constant 0 : index
    %11 = vector.load %arg4[%c0_6, %c0_7] : memref<4x128xf32, #tpu.memory_space<vmem>>, vector<4x128xf32>
    tpu.vector_store %arg4[%c0_6, %c0_7], %10 {strides = array<i32>} : memref<4x128xf32, #tpu.memory_space<vmem>>, vector<4x128xf32>,
    return
  }
  func.func @transform_0(%arg0: i32) -> (i32, i32) {
    %c0_i32 = arith.constant 0 : i32
    %c0_i32_0 = arith.constant 0 : i32
    return %arg0, %c0_i32 : i32, i32
  }
  func.func @transform_1(%arg0: i32) -> (i32, i32) {
    %c0_i32 = arith.constant 0 : i32
    %c0_i32_0 = arith.constant 0 : i32
    %c0_i32_1 = arith.constant 0 : i32
    return %c0_i32, %c0_i32_0 : i32, i32
  }
  func.func @transform_2(%arg0: i32) -> (i32, i32) {
    %c0_i32 = arith.constant 0 : i32
    %c0_i32_0 = arith.constant 0 : i32
    %c0_i32_1 = arith.constant 0 : i32
    return %c0_i32, %c0_i32_0 : i32, i32
  }
  func.func @transform_3(%arg0: i32) -> (i32, i32) {
    %c0_i32 = arith.constant 0 : i32
    %c0_i32_0 = arith.constant 0 : i32
    return %arg0, %c0_i32 : i32, i32
  }
}

</mosaic_0001>

<llo_original>
// kernel: tpu_custom_call.1
$region0: #{tpu_custom_call.1}
  #allocation0 [shape = 'u32[]', space=smem, size = 0x4, offset = 0x4, fixed_abs, tag = 'smem constant byte address 0x4 - core index']
  #allocation1 [shape = 'u32[72,128]{1,0:T(1,128)}', space=vmem, size = 0x9000, scoped, tag = 'internal scratch']
  %s0 = inlined_call_operand.hbm [shape: f32[4,128], index: 0, kind: input, shape index: {}]
  %s1 = inlined_call_operand.hbm [shape: f32[1,128], index: 1, kind: input, shape index: {}]
  %s2 = inlined_call_operand.hbm [shape: f32[128,128], index: 2, kind: input, shape index: {}]
  %s3 = inlined_call_operand.hbm [shape: f32[4,128], index: 3, kind: output, shape index: {}]
  %s4 = sld [smem:[#allocation0]]
  $region34: #{tpu_custom_call.1} parent=0
    _
  %s6 = ssub.s32 1, %s4
  %s7 = scalar_select 0, %s6, %s4
  $region1: #{tpu_custom_call.1} parent=0
    #allocation2 [shape = 'u8[2048]{0}', space=vmem, size = 0x800, scoped, tag = 'input window, operand 0, single buffered']
    #allocation3 [shape = 's32[1]{0}', space=sflag, size = 0x4, scoped, tag = 'scoped memory for tpu_custom_call.1']
    #allocation4 [shape = 's32[1]{0}', space=sflag, size = 0x4, scoped, tag = 'scoped memory for tpu_custom_call.1']
    #allocation5 [shape = 'u8[512]{0}', space=vmem, size = 0x400, scoped, tag = 'input window, operand 1, single buffered']
    #allocation6 [shape = 's32[1]{0}', space=sflag, size = 0x4, scoped, tag = 'scoped memory for tpu_custom_call.1']
    #allocation7 [shape = 'u8[65536]{0}', space=vmem, size = 0x10000, scoped, tag = 'input window, operand 2, single buffered']
    #allocation8 [shape = 'u8[2048]{0}', space=vmem, size = 0x800, scoped, tag = 'output window, operand 0, single buffered']
    %8 = vsyncpa [#allocation3], 0
    %9 = vsyncpa [#allocation6], 0
    %10 = vsyncpa [#allocation4], 0
    // Predicated region
    $region2: #{tpu_custom_call.1} parent=1 // pred_check
      _
    $region3: #{tpu_custom_call.1} parent=1 // pred_check_branch
      %12 = sbr.rel (0) target = $region5
    $region4: #{tpu_custom_call.1} parent=1 // pred_region
      %14 = vsyncadd [#allocation3], 0
      %s16 = sshll.u32 %s0, 4
      %s17 = int_to_ptr.hbm [resolvable:$true] %s16
      %s18 = sshll.u32 [#allocation2], 4
      %s19 = int_to_ptr.vmem [resolvable:$true] %s18
      %21 = dma.hbm_to_vmem [thread:$0]  %s17, 64, %s19, [#allocation3]
    $region5: #{tpu_custom_call.1} parent=1 // pred_fallthru
      _
    // Predicated region
    $region6: #{tpu_custom_call.1} parent=1 // pred_check
      _
    $region7: #{tpu_custom_call.1} parent=1 // pred_check_branch
      %23 = sbr.rel (0) target = $region9
    $region8: #{tpu_custom_call.1} parent=1 // pred_region
      %25 = vsyncadd [#allocation6], 0
      %s27 = sshll.u32 %s1, 4
      %s28 = int_to_ptr.hbm [resolvable:$true] %s27
      %s29 = sshll.u32 [#allocation5], 4
      %s30 = int_to_ptr.vmem [resolvable:$true] %s29
      %32 = dma.hbm_to_vmem [thread:$0]  %s28, 16, %s30, [#allocation6]
    $region9: #{tpu_custom_call.1} parent=1 // pred_fallthru
      _
    // Predicated region
    $region10: #{tpu_custom_call.1} parent=1 // pred_check
      _
    $region11: #{tpu_custom_call.1} parent=1 // pred_check_branch
      %34 = sbr.rel (0) target = $region13
    $region12: #{tpu_custom_call.1} parent=1 // pred_region
      %36 = vsyncadd [#allocation6], 0
      %s37 = sshll.u32 %s2, 4
      %s38 = int_to_ptr.hbm [resolvable:$true] %s37
      %s39 = sshll.u32 [#allocation7], 4
      %s40 = int_to_ptr.vmem [resolvable:$true] %s39
      %45 = dma.hbm_to_vmem [thread:$0]  %s38, 2048, %s40, [#allocation6], 128, 128, 8
    $region13: #{tpu_custom_call.1} parent=1 // pred_fallthru
      _
    // Predicated region
    $region14: #{tpu_custom_call.1} parent=1 // pred_check
      _
    $region15: #{tpu_custom_call.1} parent=1 // pred_check_branch
      %47 = sbr.rel (0) target = $region17
    $region16: #{tpu_custom_call.1} parent=1 // pred_region
      %49 = dma.done [#allocation3], 64
    $region17: #{tpu_custom_call.1} parent=1 // pred_fallthru
      _
    // Predicated region
    $region18: #{tpu_custom_call.1} parent=1 // pred_check
      _
    $region19: #{tpu_custom_call.1} parent=1 // pred_check_branch
      %51 = sbr.rel (0) target = $region21
    $region20: #{tpu_custom_call.1} parent=1 // pred_region
      %53 = dma.done [#allocation6], 16
    $region21: #{tpu_custom_call.1} parent=1 // pred_fallthru
      _
    // Predicated region
    $region22: #{tpu_custom_call.1} parent=1 // pred_check
      _
    $region23: #{tpu_custom_call.1} parent=1 // pred_check_branch
      %55 = sbr.rel (0) target = $region25
    $region24: #{tpu_custom_call.1} parent=1 // pred_region
      %57 = dma.done [#allocation6], 2048
    $region25: #{tpu_custom_call.1} parent=1 // pred_fallthru
      _
    %v58 = vld [vmem:[#allocation2] sm:$0xf]
    %v59 = vld [vmem:[#allocation5] sm:$0x1]
    %v61 = vperm.slane %v59, 0
    %v63 = vadd.f32 %v58, %v61
    %v64 = vmul.f32 %v63, 1.442695
    %v65 = vpow.pop %v64
    %v66 = vld [vmem:[#allocation7] sm:$0xff]
    %v67 = vld [vmem:[#allocation7 + $0x8] sm:$0xff]
    %v68 = vld [vmem:[#allocation7 + $0x10] sm:$0xff]
    %v69 = vld [vmem:[#allocation7 + $0x18] sm:$0xff]
    %v70 = vld [vmem:[#allocation7 + $0x20] sm:$0xff]
    %v71 = vld [vmem:[#allocation7 + $0x28] sm:$0xff]
    %v72 = vld [vmem:[#allocation7 + $0x30] sm:$0xff]
    %v73 = vld [vmem:[#allocation7 + $0x38] sm:$0xff]
    %v74 = vld [vmem:[#allocation7 + $0x40] sm:$0xff]
    %v75 = vld [vmem:[#allocation7 + $0x48] sm:$0xff]
    %v76 = vld [vmem:[#allocation7 + $0x50] sm:$0xff]
    %v77 = vld [vmem:[#allocation7 + $0x58] sm:$0xff]
    %v78 = vld [vmem:[#allocation7 + $0x60] sm:$0xff]
    %v79 = vld [vmem:[#allocation7 + $0x68] sm:$0xff]
    %v80 = vld [vmem:[#allocation7 + $0x70] sm:$0xff]
    %v81 = vld [vmem:[#allocation7 + $0x78] sm:$0xff]
    %v82 = vand.u32 %v81, 4294901760
    %83 = vmatpush.msra.mxu0 %v82
    %v84 = vand.u32 %v80, 4294901760
    %85 = vmatpush.msra.mxu0 %v84
    %v86 = vand.u32 %v79, 4294901760
    %87 = vmatpush.msra.mxu0 %v86
    %v88 = vand.u32 %v78, 4294901760
    %89 = vmatpush.msra.mxu0 %v88
    %v90 = vand.u32 %v77, 4294901760
    %91 = vmatpush.msra.mxu0 %v90
    %v92 = vand.u32 %v76, 4294901760
    %93 = vmatpush.msra.mxu0 %v92
    %v94 = vand.u32 %v75, 4294901760
    %95 = vmatpush.msra.mxu0 %v94
    %v96 = vand.u32 %v74, 4294901760
    %97 = vmatpush.msra.mxu0 %v96
    %v98 = vand.u32 %v73, 4294901760
    %99 = vmatpush.msra.mxu0 %v98
    %v100 = vand.u32 %v72, 4294901760
    %101 = vmatpush.msra.mxu0 %v100
    %v102 = vand.u32 %v71, 4294901760
    %103 = vmatpush.msra.mxu0 %v102
    %v104 = vand.u32 %v70, 4294901760
    %105 = vmatpush.msra.mxu0 %v104
    %v106 = vand.u32 %v69, 4294901760
    %107 = vmatpush.msra.mxu0 %v106
    %v108 = vand.u32 %v68, 4294901760
    %109 = vmatpush.msra.mxu0 %v108
    %v110 = vand.u32 %v67, 4294901760
    %111 = vmatpush.msra.mxu0 %v110
    %v112 = vand.u32 %v66, 4294901760
    %113 = vmatpush.msra.mxu0 %v112
    %v114 = vand.u32 %v65, 4294901760
    %v115 = vsub.f32 %v65, %v114
    %v116 = vand.u32 %v115, 4294901760
    %v117 = vsub.f32 %v115, %v116
    %v118 = vand.u32 %v117, 4294901760
    %119 = vmatmul.f32.gmra.mxu0 %v118
    %v120 = vpop.f32.mrf.mxu0
    %v121 = vadd.f32 1.0, %v120
    %122 = vdwg.mxu0
    %v123 = vand.u32 %v81, 4294901760
    %v124 = vsub.f32 %v81, %v123
    %v125 = vand.u32 %v124, 4294901760
    %v126 = vsub.f32 %v124, %v125
    %v127 = vand.u32 %v126, 4294901760
    %128 = vmatpush.msra.mxu0 %v127
    %v129 = vand.u32 %v80, 4294901760
    %v130 = vsub.f32 %v80, %v129
    %v131 = vand.u32 %v130, 4294901760
    %v132 = vsub.f32 %v130, %v131
    %v133 = vand.u32 %v132, 4294901760
    %134 = vmatpush.msra.mxu0 %v133
    %v135 = vand.u32 %v79, 4294901760
    %v136 = vsub.f32 %v79, %v135
    %v137 = vand.u32 %v136, 4294901760
    %v138 = vsub.f32 %v136, %v137
    %v139 = vand.u32 %v138, 4294901760
    %140 = vmatpush.msra.mxu0 %v139
    %v141 = vand.u32 %v78, 4294901760
    %v142 = vsub.f32 %v78, %v141
    %v143 = vand.u32 %v142, 4294901760
    %v144 = vsub.f32 %v142, %v143
    %v145 = vand.u32 %v144, 4294901760
    %146 = vmatpush.msra.mxu0 %v145
    %v147 = vand.u32 %v77, 4294901760
    %v148 = vsub.f32 %v77, %v147
    %v149 = vand.u32 %v148, 4294901760
    %v150 = vsub.f32 %v148, %v149
    %v151 = vand.u32 %v150, 4294901760
    %152 = vmatpush.msra.mxu0 %v151
    %v153 = vand.u32 %v76, 4294901760
    %v154 = vsub.f32 %v76, %v153
    %v155 = vand.u32 %v154, 4294901760
    %v156 = vsub.f32 %v154, %v155
    %v157 = vand.u32 %v156, 4294901760
    %158 = vmatpush.msra.mxu0 %v157
    %v159 = vand.u32 %v75, 4294901760
    %v160 = vsub.f32 %v75, %v159
    %v161 = vand.u32 %v160, 4294901760
    %v162 = vsub.f32 %v160, %v161
    %v163 = vand.u32 %v162, 4294901760
    %164 = vmatpush.msra.mxu0 %v163
    %v165 = vand.u32 %v74, 4294901760
    %v166 = vsub.f32 %v74, %v165
    %v167 = vand.u32 %v166, 4294901760
    %v168 = vsub.f32 %v166, %v167
    %v169 = vand.u32 %v168, 4294901760
    %170 = vmatpush.msra.mxu0 %v169
    %v171 = vand.u32 %v73, 4294901760
    %v172 = vsub.f32 %v73, %v171
    %v173 = vand.u32 %v172, 4294901760
    %v174 = vsub.f32 %v172, %v173
    %v175 = vand.u32 %v174, 4294901760
    %176 = vmatpush.msra.mxu0 %v175
    %v177 = vand.u32 %v72, 4294901760
    %v178 = vsub.f32 %v72, %v177
    %v179 = vand.u32 %v178, 4294901760
    %v180 = vsub.f32 %v178, %v179
    %v181 = vand.u32 %v180, 4294901760
    %182 = vmatpush.msra.mxu0 %v181
    %v183 = vand.u32 %v71, 4294901760
    %v184 = vsub.f32 %v71, %v183
    %v185 = vand.u32 %v184, 4294901760
    %v186 = vsub.f32 %v184, %v185
    %v187 = vand.u32 %v186, 4294901760
    %188 = vmatpush.msra.mxu0 %v187
    %v189 = vand.u32 %v70, 4294901760
    %v190 = vsub.f32 %v70, %v189
    %v191 = vand.u32 %v190, 4294901760
    %v192 = vsub.f32 %v190, %v191
    %v193 = vand.u32 %v192, 4294901760
    %194 = vmatpush.msra.mxu0 %v193
    %v195 = vand.u32 %v69, 4294901760
    %v196 = vsub.f32 %v69, %v195
    %v197 = vand.u32 %v196, 4294901760
    %v198 = vsub.f32 %v196, %v197
    %v199 = vand.u32 %v198, 4294901760
    %200 = vmatpush.msra.mxu0 %v199
    %v201 = vand.u32 %v68, 4294901760
    %v202 = vsub.f32 %v68, %v201
    %v203 = vand.u32 %v202, 4294901760
    %v204 = vsub.f32 %v202, %v203
    %v205 = vand.u32 %v204, 4294901760
    %206 = vmatpush.msra.mxu0 %v205
    %v207 = vand.u32 %v67, 4294901760
    %v208 = vsub.f32 %v67, %v207
    %v209 = vand.u32 %v208, 4294901760
    %v210 = vsub.f32 %v208, %v209
    %v211 = vand.u32 %v210, 4294901760
    %212 = vmatpush.msra.mxu0 %v211
    %v213 = vand.u32 %v66, 4294901760
    %v214 = vsub.f32 %v66, %v213
    %v215 = vand.u32 %v214, 4294901760
    %v216 = vsub.f32 %v214, %v215
    %v217 = vand.u32 %v216, 4294901760
    %218 = vmatpush.msra.mxu0 %v217
    %v219 = vand.u32 %v65, 4294901760
    %220 = vmatmul.f32.gmra.mxu0 %v219
    %v221 = vpop.f32.mrf.mxu0
    %v222 = vadd.f32 %v121, %v221
    %223 = vdwg.mxu0
    %v224 = vand.u32 %v81, 4294901760
    %v225 = vsub.f32 %v81, %v224
    %226 = vmatpush.msra.mxu0 %v225
    %v227 = vand.u32 %v80, 4294901760
    %v228 = vsub.f32 %v80, %v227
    %229 = vmatpush.msra.mxu0 %v228
    %v230 = vand.u32 %v79, 4294901760
    %v231 = vsub.f32 %v79, %v230
    %232 = vmatpush.msra.mxu0 %v231
    %v233 = vand.u32 %v78, 4294901760
    %v234 = vsub.f32 %v78, %v233
    %235 = vmatpush.msra.mxu0 %v234
    %v236 = vand.u32 %v77, 4294901760
    %v237 = vsub.f32 %v77, %v236
    %238 = vmatpush.msra.mxu0 %v237
    %v239 = vand.u32 %v76, 4294901760
    %v240 = vsub.f32 %v76, %v239
    %241 = vmatpush.msra.mxu0 %v240
    %v242 = vand.u32 %v75, 4294901760
    %v243 = vsub.f32 %v75, %v242
    %244 = vmatpush.msra.mxu0 %v243
    %v245 = vand.u32 %v74, 4294901760
    %v246 = vsub.f32 %v74, %v245
    %247 = vmatpush.msra.mxu0 %v246
    %v248 = vand.u32 %v73, 4294901760
    %v249 = vsub.f32 %v73, %v248
    %250 = vmatpush.msra.mxu0 %v249
    %v251 = vand.u32 %v72, 4294901760
    %v252 = vsub.f32 %v72, %v251
    %253 = vmatpush.msra.mxu0 %v252
    %v254 = vand.u32 %v71, 4294901760
    %v255 = vsub.f32 %v71, %v254
    %256 = vmatpush.msra.mxu0 %v255
    %v257 = vand.u32 %v70, 4294901760
    %v258 = vsub.f32 %v70, %v257
    %259 = vmatpush.msra.mxu0 %v258
    %v260 = vand.u32 %v69, 4294901760
    %v261 = vsub.f32 %v69, %v260
    %262 = vmatpush.msra.mxu0 %v261
    %v263 = vand.u32 %v68, 4294901760
    %v264 = vsub.f32 %v68, %v263
    %265 = vmatpush.msra.mxu0 %v264
    %v266 = vand.u32 %v67, 4294901760
    %v267 = vsub.f32 %v67, %v266
    %268 = vmatpush.msra.mxu0 %v267
    %v269 = vand.u32 %v66, 4294901760
    %v270 = vsub.f32 %v66, %v269
    %271 = vmatpush.msra.mxu0 %v270
    %v272 = vand.u32 %v65, 4294901760
    %v273 = vsub.f32 %v65, %v272
    %274 = vmatmul.f32.gmra.mxu0 %v273
    %v275 = vpop.f32.mrf.mxu0
    %v276 = vadd.f32 %v222, %v275
    %277 = vdwg.mxu0
    %v278 = vand.u32 %v81, 4294901760
    %279 = vmatpush.msra.mxu0 %v278
    %v280 = vand.u32 %v80, 4294901760
    %281 = vmatpush.msra.mxu0 %v280
    %v282 = vand.u32 %v79, 4294901760
    %283 = vmatpush.msra.mxu0 %v282
    %v284 = vand.u32 %v78, 4294901760
    %285 = vmatpush.msra.mxu0 %v284
    %v286 = vand.u32 %v77, 4294901760
    %287 = vmatpush.msra.mxu0 %v286
    %v288 = vand.u32 %v76, 4294901760
    %289 = vmatpush.msra.mxu0 %v288
    %v290 = vand.u32 %v75, 4294901760
    %291 = vmatpush.msra.mxu0 %v290
    %v292 = vand.u32 %v74, 4294901760
    %293 = vmatpush.msra.mxu0 %v292
    %v294 = vand.u32 %v73, 4294901760
    %295 = vmatpush.msra.mxu0 %v294
    %v296 = vand.u32 %v72, 4294901760
    %297 = vmatpush.msra.mxu0 %v296
    %v298 = vand.u32 %v71, 4294901760
    %299 = vmatpush.msra.mxu0 %v298
    %v300 = vand.u32 %v70, 4294901760
    %301 = vmatpush.msra.mxu0 %v300
    %v302 = vand.u32 %v69, 4294901760
    %303 = vmatpush.msra.mxu0 %v302
    %v304 = vand.u32 %v68, 4294901760
    %305 = vmatpush.msra.mxu0 %v304
    %v306 = vand.u32 %v67, 4294901760
    %307 = vmatpush.msra.mxu0 %v306
    %v308 = vand.u32 %v66, 4294901760
    %309 = vmatpush.msra.mxu0 %v308
    %v310 = vand.u32 %v65, 4294901760
    %v311 = vsub.f32 %v65, %v310
    %v312 = vand.u32 %v311, 4294901760
    %313 = vmatmul.f32.gmra.mxu0 %v312
    %v314 = vpop.f32.mrf.mxu0
    %v315 = vadd.f32 %v276, %v314
    %316 = vdwg.mxu0
    %v317 = vand.u32 %v81, 4294901760
    %v318 = vsub.f32 %v81, %v317
    %v319 = vand.u32 %v318, 4294901760
    %320 = vmatpush.msra.mxu0 %v319
    %v321 = vand.u32 %v80, 4294901760
    %v322 = vsub.f32 %v80, %v321
    %v323 = vand.u32 %v322, 4294901760
    %324 = vmatpush.msra.mxu0 %v323
    %v325 = vand.u32 %v79, 4294901760
    %v326 = vsub.f32 %v79, %v325
    %v327 = vand.u32 %v326, 4294901760
    %328 = vmatpush.msra.mxu0 %v327
    %v329 = vand.u32 %v78, 4294901760
    %v330 = vsub.f32 %v78, %v329
    %v331 = vand.u32 %v330, 4294901760
    %332 = vmatpush.msra.mxu0 %v331
    %v333 = vand.u32 %v77, 4294901760
    %v334 = vsub.f32 %v77, %v333
    %v335 = vand.u32 %v334, 4294901760
    %336 = vmatpush.msra.mxu0 %v335
    %v337 = vand.u32 %v76, 4294901760
    %v338 = vsub.f32 %v76, %v337
    %v339 = vand.u32 %v338, 4294901760
    %340 = vmatpush.msra.mxu0 %v339
    %v341 = vand.u32 %v75, 4294901760
    %v342 = vsub.f32 %v75, %v341
    %v343 = vand.u32 %v342, 4294901760
    %344 = vmatpush.msra.mxu0 %v343
    %v345 = vand.u32 %v74, 4294901760
    %v346 = vsub.f32 %v74, %v345
    %v347 = vand.u32 %v346, 4294901760
    %348 = vmatpush.msra.mxu0 %v347
    %v349 = vand.u32 %v73, 4294901760
    %v350 = vsub.f32 %v73, %v349
    %v351 = vand.u32 %v350, 4294901760
    %352 = vmatpush.msra.mxu0 %v351
    %v353 = vand.u32 %v72, 4294901760
    %v354 = vsub.f32 %v72, %v353
    %v355 = vand.u32 %v354, 4294901760
    %356 = vmatpush.msra.mxu0 %v355
    %v357 = vand.u32 %v71, 4294901760
    %v358 = vsub.f32 %v71, %v357
    %v359 = vand.u32 %v358, 4294901760
    %360 = vmatpush.msra.mxu0 %v359
    %v361 = vand.u32 %v70, 4294901760
    %v362 = vsub.f32 %v70, %v361
    %v363 = vand.u32 %v362, 4294901760
    %364 = vmatpush.msra.mxu0 %v363
    %v365 = vand.u32 %v69, 4294901760
    %v366 = vsub.f32 %v69, %v365
    %v367 = vand.u32 %v366, 4294901760
    %368 = vmatpush.msra.mxu0 %v367
    %v369 = vand.u32 %v68, 4294901760
    %v370 = vsub.f32 %v68, %v369
    %v371 = vand.u32 %v370, 4294901760
    %372 = vmatpush.msra.mxu0 %v371
    %v373 = vand.u32 %v67, 4294901760
    %v374 = vsub.f32 %v67, %v373
    %v375 = vand.u32 %v374, 4294901760
    %376 = vmatpush.msra.mxu0 %v375
    %v377 = vand.u32 %v66, 4294901760
    %v378 = vsub.f32 %v66, %v377
    %v379 = vand.u32 %v378, 4294901760
    %380 = vmatpush.msra.mxu0 %v379
    %v381 = vand.u32 %v65, 4294901760
    %382 = vmatmul.f32.gmra.mxu0 %v381
    %v383 = vpop.f32.mrf.mxu0
    %v384 = vadd.f32 %v315, %v383
    %385 = vdwg.mxu0
    %v386 = vand.u32 %v81, 4294901760
    %387 = vmatpush.msra.mxu0 %v386
    %v388 = vand.u32 %v80, 4294901760
    %389 = vmatpush.msra.mxu0 %v388
    %v390 = vand.u32 %v79, 4294901760
    %391 = vmatpush.msra.mxu0 %v390
    %v392 = vand.u32 %v78, 4294901760
    %393 = vmatpush.msra.mxu0 %v392
    %v394 = vand.u32 %v77, 4294901760
    %395 = vmatpush.msra.mxu0 %v394
    %v396 = vand.u32 %v76, 4294901760
    %397 = vmatpush.msra.mxu0 %v396
    %v398 = vand.u32 %v75, 4294901760
    %399 = vmatpush.msra.mxu0 %v398
    %v400 = vand.u32 %v74, 4294901760
    %401 = vmatpush.msra.mxu0 %v400
    %v402 = vand.u32 %v73, 4294901760
    %403 = vmatpush.msra.mxu0 %v402
    %v404 = vand.u32 %v72, 4294901760
    %405 = vmatpush.msra.mxu0 %v404
    %v406 = vand.u32 %v71, 4294901760
    %407 = vmatpush.msra.mxu0 %v406
    %v408 = vand.u32 %v70, 4294901760
    %409 = vmatpush.msra.mxu0 %v408
    %v410 = vand.u32 %v69, 4294901760
    %411 = vmatpush.msra.mxu0 %v410
    %v412 = vand.u32 %v68, 4294901760
    %413 = vmatpush.msra.mxu0 %v412
    %v414 = vand.u32 %v67, 4294901760
    %415 = vmatpush.msra.mxu0 %v414
    %v416 = vand.u32 %v66, 4294901760
    %417 = vmatpush.msra.mxu0 %v416
    %v418 = vand.u32 %v65, 4294901760
    %419 = vmatmul.f32.gmra.mxu0 %v418
    %v420 = vpop.f32.mrf.mxu0
    %v421 = vadd.f32 %v384, %v420
    %422 = vdwg.mxu0
    %v423 = vrcp.pop %v421
    %v424 = vmul.f32 %v421, %v423
    %v425 = vsub.f32 1.0, %v424
    %v426 = vmul.f32 %v423, %v425
    %v427 = vadd.f32 %v423, %v426
    %vm428 = vweird.f32 %v421
    %vm429 = vweird.f32 %v423
    %vm430 = vmor %vm428, %vm429
    %v431 = vsel %vm430, %v423, %v427
    %v432 = vand.u32 2147483647, %v421
    %vm433 = vcmp.eq.f32.partialorder %v432, 8.507059e+37
    %v434 = vand.u32 %v421, 2147483648
    %v435 = vor.u32 1.1754944e-38, %v434
    %v436 = vsel %vm433, %v435, %v431
    %v437 = vmul.f32 %v65, %v436
    %438 = vst [vmem:[#allocation8] sm:$0xf] %v437
    // Predicated region
    $region26: #{tpu_custom_call.1} parent=1 // pred_check
      _
    $region27: #{tpu_custom_call.1} parent=1 // pred_check_branch
      %440 = sbr.rel (0) target = $region29
    $region28: #{tpu_custom_call.1} parent=1 // pred_region
      %442 = vsyncadd [#allocation4], 0
      %s444 = sshll.u32 [#allocation8], 4
      %s445 = int_to_ptr.vmem [resolvable:$true] %s444
      %s446 = sshll.u32 %s3, 4
      %s447 = int_to_ptr.hbm [resolvable:$true] %s446
      %449 = dma.vmem_to_hbm [thread:$0]  %s445, 64, %s447, [#allocation4]
    $region29: #{tpu_custom_call.1} parent=1 // pred_fallthru
      _
    // Predicated region
    $region30: #{tpu_custom_call.1} parent=1 // pred_check
      _
    $region31: #{tpu_custom_call.1} parent=1 // pred_check_branch
      %451 = sbr.rel (0) target = $region33
    $region32: #{tpu_custom_call.1} parent=1 // pred_region
      %453 = dma.done [#allocation4], 64
    $region33: #{tpu_custom_call.1} parent=1 // pred_fallthru
      _
    %454 = vsyncpa [#allocation3], 1
    %455 = vsyncpa [#allocation6], 1
    %456 = vsyncpa [#allocation4], 1

</llo_original>
